<compile_context>
chip_gen: v5e
topology: v5e:2x2
jax: 0.10.0
libtpu: 0.0.40
codegen_flags: <defaults>
</compile_context>

<pallas_src>
import jax
import jax.numpy as jnp
from jax.experimental import pallas as pl
from jax.experimental.pallas import tpu as pltpu

_BN_EPS = 1e-5
_SOFTPLUS_THRESHOLD = 20.0  # PyTorch F.softplus threshold


def _mish(x):
    """Mish(x) = x * tanh(softplus(x)); single exp + approx reciprocal (kernel-only)."""
    e = jnp.exp(jnp.minimum(x, _SOFTPLUS_THRESHOLD))  # clamp == PyTorch softplus threshold
    t = (1.0 + e) * (1.0 + e)
    # tanh(log1p(e)) == (t - 1) / (t + 1)  =>  mish = x - 2x / (t + 1)
    return x - (2.0 * x) * pl.reciprocal(t + 1.0, approx=True)


def _bn_train(h, gamma, beta):
    """Training-mode BatchNorm1d folded to one scale/shift (FMA) per element."""
    n_inv = 1.0 / h.shape[0]
    mean = jnp.sum(h, axis=0, keepdims=True) * n_inv
    var = jnp.sum(h * h, axis=0, keepdims=True) * n_inv - mean * mean  # biased var
    scale = gamma * jax.lax.rsqrt(var + _BN_EPS)
    shift = beta - mean * scale
    return h * scale + shift


def init_params(key, n_features, hidden1, hidden2, n_output):
    """PyTorch-style init. Linear weights returned pre-transposed as (in, out)."""
    ks = jax.random.split(key, 6)

    def linear(kw, kb, fan_in, fan_out):
        bound = 1.0 / jnp.sqrt(fan_in)
        w = jax.random.uniform(kw, (fan_in, fan_out), jnp.float32, -bound, bound)
        b = jax.random.uniform(kb, (1, fan_out), jnp.float32, -bound, bound)
        return w, b

    w1, b1 = linear(ks[0], ks[1], n_features, hidden1)
    w2, b2 = linear(ks[2], ks[3], hidden1, hidden2)
    w3, b3 = linear(ks[4], ks[5], hidden2, n_output)
    # BatchNorm1d default init: gamma = 1, beta = 0
    g1, be1 = jnp.ones((1, hidden1), jnp.float32), jnp.zeros((1, hidden1), jnp.float32)
    g2, be2 = jnp.ones((1, hidden2), jnp.float32), jnp.zeros((1, hidden2), jnp.float32)
    return (w1, b1, g1, be1, w2, b2, g2, be2, w3, b3)


def mishnn_forward(x, params):
    w1, b1, g1, be1, w2, b2, g2, be2, w3, b3 = params
    del b1, b2  # exactly cancelled by the following training-mode BatchNorm layers
    batch = x.shape[0]
    h1, h2, n_out = w1.shape[1], w2.shape[1], w3.shape[1]
    width = max(h1, h2, n_out)

    def _row(v):
        v = v.reshape(1, -1)
        return jnp.pad(v, ((0, 0), (0, width - v.shape[1])))

    # One packed slab -> a single DMA for all small per-layer vectors.
    slab = jnp.concatenate([_row(g1), _row(be1), _row(g2), _row(be2), _row(b3)], axis=0)

    def kernel(x_ref, w1_ref, w2_ref, w3_ref, slab_ref, o_ref):
        xv = x_ref[...]
        sl = slab_ref[...]
        a1 = _mish(_bn_train(
            jnp.dot(xv, w1_ref[...], preferred_element_type=jnp.float32),
            sl[0:1, :h1], sl[1:2, :h1]))
        a2 = _mish(_bn_train(
            jnp.dot(a1, w2_ref[...], preferred_element_type=jnp.float32),
            sl[2:3, :h2], sl[3:4, :h2]))
        o_ref[...] = (jnp.dot(a2, w3_ref[...], preferred_element_type=jnp.float32)
                      + sl[4:5, :n_out])

    # TODO(synk): for batches too large to keep x/h1/h2 resident in VMEM (~32 MiB
    # scoped; 64 MiB physical per TC on v7x), switch to a batch-tiled two-pass
    # pipeline (per-tile matmul + sum/sum-sq accumulation, then normalize+mish) so
    # BatchNorm keeps *global* batch statistics and the batch axis can be "parallel".
    vmem = pl.BlockSpec(memory_space=pltpu.MemorySpace.VMEM)
    return pl.pallas_call(
        kernel,
        out_shape=jax.ShapeDtypeStruct((batch, n_out), jnp.float32),
        in_specs=[vmem] * 5,
        out_specs=vmem,
        compiler_params=pltpu.CompilerParams(vmem_limit_bytes=32 * 1024 * 1024),
    )(x, w1, w2, w3, slab)


mishnn_forward = jax.jit(mishnn_forward)


if __name__ == "__main__":
    B, n_features, hidden1, hidden2, n_output = 8, 16, 32, 32, 4

    key = jax.random.PRNGKey(0)
    kx, kp = jax.random.split(key)
    x = jax.random.normal(kx, (B, n_features), jnp.float32)
    params = init_params(kp, n_features, hidden1, hidden2, n_output)

    out = mishnn_forward(x, params)
    jax.block_until_ready(out)

    # Pure-JAX, PyTorch-faithful reference (keeps b1/b2, thresholded softplus, tanh).
    def _ref(x, p):
        w1, b1, g1, be1, w2, b2, g2, be2, w3, b3 = p

        def bn(h, g, b):
            m = jnp.mean(h, axis=0, keepdims=True)
            v = jnp.mean((h - m) ** 2, axis=0, keepdims=True)
            return (h - m) * jax.lax.rsqrt(v + _BN_EPS) * g + b

        def mish(h):
            sp = jnp.where(h > _SOFTPLUS_THRESHOLD, h,
                           jnp.log1p(jnp.exp(jnp.minimum(h, _SOFTPLUS_THRESHOLD))))
            return h * jnp.tanh(sp)

        h = mish(bn(x @ w1 + b1, g1, be1))
        h = mish(bn(h @ w2 + b2, g2, be2))
        return h @ w3 + b3

    ref = _ref(x, params)
    # Tolerance covers the approximate EUP reciprocal used inside the fused Mish.
    assert jnp.allclose(out, ref, atol=1e-2, rtol=1e-2), float(jnp.max(jnp.abs(out - ref)))
    print("KERNEL_OK")
</pallas_src>

<mosaic_0001>
module attributes {stable_mosaic.version = 11 : i64} {
  func.func @kernel(%arg0: memref<8x16xf32, #tpu.memory_space<vmem>>, %arg1: memref<16x32xf32, #tpu.memory_space<vmem>>, %arg2: memref<32x32xf32, #tpu.memory_space<vmem>>, %arg3: memref<32x4xf32, #tpu.memory_space<vmem>>, %arg4: memref<5x32xf32, #tpu.memory_space<vmem>>, %arg5: memref<8x4xf32, #tpu.memory_space<vmem>>) attributes {dimension_semantics = [], scalar_prefetch = 0 : i64, scratch_operands = 0 : i64, tpu.core_type = #tpu.core_type<tc>} {
    %c0 = arith.constant 0 : index
    %c0_0 = arith.constant 0 : index
    %0 = vector.load %arg0[%c0, %c0_0] : memref<8x16xf32, #tpu.memory_space<vmem>>, vector<8x16xf32>
    %c0_1 = arith.constant 0 : index
    %c0_2 = arith.constant 0 : index
    %1 = vector.load %arg4[%c0_1, %c0_2] : memref<5x32xf32, #tpu.memory_space<vmem>>, vector<5x32xf32>
    %c0_3 = arith.constant 0 : index
    %c0_4 = arith.constant 0 : index
    %2 = vector.load %arg1[%c0_3, %c0_4] : memref<16x32xf32, #tpu.memory_space<vmem>>, vector<16x32xf32>
    %cst = arith.constant dense<0.000000e+00> : vector<8x32xf32>
    %3 = tpu.matmul %0, %2, %cst {dimension_numbers = #tpu.dot_dimension_numbers<[1], [0], [0], [1], [0, 0, 1, 1], [], []>} : vector<8x16xf32>, vector<16x32xf32>, vector<8x32xf32> -> vector<8x32xf32>
    %4 = vector.extract_strided_slice %1 {offsets = [0, 0], sizes = [1, 32], strides = [1, 1]} : vector<5x32xf32> to vector<1x32xf32>
    %5 = vector.extract_strided_slice %1 {offsets = [1, 0], sizes = [1, 32], strides = [1, 1]} : vector<5x32xf32> to vector<1x32xf32>
    %cst_5 = arith.constant dense<0.000000e+00> : vector<32xf32>
    %6 = vector.multi_reduction <add>, %3, %cst_5 [0] : vector<8x32xf32> to vector<32xf32>
    %7 = vector.shape_cast %6 : vector<32xf32> to vector<1x32xf32>
    %cst_6 = arith.constant 1.250000e-01 : f32
    %8 = vector.broadcast %cst_6 : f32 to vector<1x32xf32>
    %9 = arith.mulf %7, %8 : vector<1x32xf32>
    %10 = arith.mulf %3, %3 : vector<8x32xf32>
    %cst_7 = arith.constant dense<0.000000e+00> : vector<32xf32>
    %11 = vector.multi_reduction <add>, %10, %cst_7 [0] : vector<8x32xf32> to vector<32xf32>
    %12 = vector.shape_cast %11 : vector<32xf32> to vector<1x32xf32>
    %cst_8 = arith.constant 1.250000e-01 : f32
    %13 = vector.broadcast %cst_8 : f32 to vector<1x32xf32>
    %14 = arith.mulf %12, %13 : vector<1x32xf32>
    %15 = arith.mulf %9, %9 : vector<1x32xf32>
    %16 = arith.subf %14, %15 : vector<1x32xf32>
    %cst_9 = arith.constant 9.99999974E-6 : f32
    %17 = vector.broadcast %cst_9 : f32 to vector<1x32xf32>
    %18 = arith.addf %16, %17 : vector<1x32xf32>
    %19 = math.rsqrt %18 : vector<1x32xf32>
    %20 = arith.mulf %4, %19 : vector<1x32xf32>
    %21 = arith.mulf %9, %20 : vector<1x32xf32>
    %22 = arith.subf %5, %21 : vector<1x32xf32>
    %23 = vector.broadcast %20 : vector<1x32xf32> to vector<8x32xf32>
    %24 = arith.mulf %3, %23 : vector<8x32xf32>
    %25 = vector.broadcast %22 : vector<1x32xf32> to vector<8x32xf32>
    %26 = arith.addf %24, %25 : vector<8x32xf32>
    %cst_10 = arith.constant 2.000000e+01 : f32
    %27 = vector.broadcast %cst_10 : f32 to vector<8x32xf32>
    %28 = arith.minimumf %26, %27 : vector<8x32xf32>
    %29 = math.exp %28 : vector<8x32xf32>
    %cst_11 = arith.constant 1.000000e+00 : f32
    %30 = vector.broadcast %cst_11 : f32 to vector<8x32xf32>
    %31 = arith.addf %30, %29 : vector<8x32xf32>
    %cst_12 = arith.constant 1.000000e+00 : f32
    %32 = vector.broadcast %cst_12 : f32 to vector<8x32xf32>
    %33 = arith.addf %32, %29 : vector<8x32xf32>
    %34 = arith.mulf %31, %33 : vector<8x32xf32>
    %cst_13 = arith.constant 2.000000e+00 : f32
    %35 = vector.broadcast %cst_13 : f32 to vector<8x32xf32>
    %36 = arith.mulf %35, %26 : vector<8x32xf32>
    %cst_14 = arith.constant 1.000000e+00 : f32
    %37 = vector.broadcast %cst_14 : f32 to vector<8x32xf32>
    %38 = arith.addf %34, %37 : vector<8x32xf32>
    %39 = tpu.reciprocal %38 {approx = true} : vector<8x32xf32> -> vector<8x32xf32>
    %40 = arith.mulf %36, %39 : vector<8x32xf32>
    %41 = arith.subf %26, %40 : vector<8x32xf32>
    %c0_15 = arith.constant 0 : index
    %c0_16 = arith.constant 0 : index
    %42 = vector.load %arg2[%c0_15, %c0_16] : memref<32x32xf32, #tpu.memory_space<vmem>>, vector<32x32xf32>
    %cst_17 = arith.constant dense<0.000000e+00> : vector<8x32xf32>
    %43 = tpu.matmul %41, %42, %cst_17 {dimension_numbers = #tpu.dot_dimension_numbers<[1], [0], [0], [1], [0, 0, 1, 1], [], []>} : vector<8x32xf32>, vector<32x32xf32>, vector<8x32xf32> -> vector<8x32xf32>
    %44 = vector.extract_strided_slice %1 {offsets = [2, 0], sizes = [1, 32], strides = [1, 1]} : vector<5x32xf32> to vector<1x32xf32>
    %45 = vector.extract_strided_slice %1 {offsets = [3, 0], sizes = [1, 32], strides = [1, 1]} : vector<5x32xf32> to vector<1x32xf32>
    %cst_18 = arith.constant dense<0.000000e+00> : vector<32xf32>
    %46 = vector.multi_reduction <add>, %43, %cst_18 [0] : vector<8x32xf32> to vector<32xf32>
    %47 = vector.shape_cast %46 : vector<32xf32> to vector<1x32xf32>
    %cst_19 = arith.constant 1.250000e-01 : f32
    %48 = vector.broadcast %cst_19 : f32 to vector<1x32xf32>
    %49 = arith.mulf %47, %48 : vector<1x32xf32>
    %50 = arith.mulf %43, %43 : vector<8x32xf32>
    %cst_20 = arith.constant dense<0.000000e+00> : vector<32xf32>
    %51 = vector.multi_reduction <add>, %50, %cst_20 [0] : vector<8x32xf32> to vector<32xf32>
    %52 = vector.shape_cast %51 : vector<32xf32> to vector<1x32xf32>
    %cst_21 = arith.constant 1.250000e-01 : f32
    %53 = vector.broadcast %cst_21 : f32 to vector<1x32xf32>
    %54 = arith.mulf %52, %53 : vector<1x32xf32>
    %55 = arith.mulf %49, %49 : vector<1x32xf32>
    %56 = arith.subf %54, %55 : vector<1x32xf32>
    %cst_22 = arith.constant 9.99999974E-6 : f32
    %57 = vector.broadcast %cst_22 : f32 to vector<1x32xf32>
    %58 = arith.addf %56, %57 : vector<1x32xf32>
    %59 = math.rsqrt %58 : vector<1x32xf32>
    %60 = arith.mulf %44, %59 : vector<1x32xf32>
    %61 = arith.mulf %49, %60 : vector<1x32xf32>
    %62 = arith.subf %45, %61 : vector<1x32xf32>
    %63 = vector.broadcast %60 : vector<1x32xf32> to vector<8x32xf32>
    %64 = arith.mulf %43, %63 : vector<8x32xf32>
    %65 = vector.broadcast %62 : vector<1x32xf32> to vector<8x32xf32>
    %66 = arith.addf %64, %65 : vector<8x32xf32>
    %cst_23 = arith.constant 2.000000e+01 : f32
    %67 = vector.broadcast %cst_23 : f32 to vector<8x32xf32>
    %68 = arith.minimumf %66, %67 : vector<8x32xf32>
    %69 = math.exp %68 : vector<8x32xf32>
    %cst_24 = arith.constant 1.000000e+00 : f32
    %70 = vector.broadcast %cst_24 : f32 to vector<8x32xf32>
    %71 = arith.addf %70, %69 : vector<8x32xf32>
    %cst_25 = arith.constant 1.000000e+00 : f32
    %72 = vector.broadcast %cst_25 : f32 to vector<8x32xf32>
    %73 = arith.addf %72, %69 : vector<8x32xf32>
    %74 = arith.mulf %71, %73 : vector<8x32xf32>
    %cst_26 = arith.constant 2.000000e+00 : f32
    %75 = vector.broadcast %cst_26 : f32 to vector<8x32xf32>
    %76 = arith.mulf %75, %66 : vector<8x32xf32>
    %cst_27 = arith.constant 1.000000e+00 : f32
    %77 = vector.broadcast %cst_27 : f32 to vector<8x32xf32>
    %78 = arith.addf %74, %77 : vector<8x32xf32>
    %79 = tpu.reciprocal %78 {approx = true} : vector<8x32xf32> -> vector<8x32xf32>
    %80 = arith.mulf %76, %79 : vector<8x32xf32>
    %81 = arith.subf %66, %80 : vector<8x32xf32>
    %c0_28 = arith.constant 0 : index
    %c0_29 = arith.constant 0 : index
    %82 = vector.load %arg3[%c0_28, %c0_29] : memref<32x4xf32, #tpu.memory_space<vmem>>, vector<32x4xf32>
    %cst_30 = arith.constant dense<0.000000e+00> : vector<8x4xf32>
    %83 = tpu.matmul %81, %82, %cst_30 {dimension_numbers = #tpu.dot_dimension_numbers<[1], [0], [0], [1], [0, 0, 1, 1], [], []>} : vector<8x32xf32>, vector<32x4xf32>, vector<8x4xf32> -> vector<8x4xf32>
    %84 = vector.extract_strided_slice %1 {offsets = [4, 0], sizes = [1, 4], strides = [1, 1]} : vector<5x32xf32> to vector<1x4xf32>
    %85 = vector.broadcast %84 : vector<1x4xf32> to vector<8x4xf32>
    %86 = arith.addf %83, %85 : vector<8x4xf32>
    %c0_31 = arith.constant 0 : index
    %c0_32 = arith.constant 0 : index
    %87 = vector.load %arg5[%c0_31, %c0_32] : memref<8x4xf32, #tpu.memory_space<vmem>>, vector<8x4xf32>
    tpu.vector_store %arg5[%c0_31, %c0_32], %86 {strides = array<i32>} : memref<8x4xf32, #tpu.memory_space<vmem>>, vector<8x4xf32>,
    return
  }
}

</mosaic_0001>

<llo_original>
// kernel: mishnn_forward.1
$region0: #{mishnn_forward.1}
  #allocation0 [shape = 'u32[]', space=smem, size = 0x4, offset = 0x4, fixed_abs, tag = 'smem constant byte address 0x4 - core index']
  #allocation1 [shape = 'u32[72,128]{1,0:T(1,128)}', space=vmem, size = 0x9000, scoped, tag = 'internal scratch']
  %s0 = inlined_call_operand.vmem [shape: f32[8,16], index: 0, kind: input, shape index: {}]
  %s1 = inlined_call_operand.hbm [shape: f32[16,32], index: 1, kind: input, shape index: {}]
  %s2 = inlined_call_operand.vmem [shape: f32[32,32], index: 2, kind: input, shape index: {}]
  %s3 = inlined_call_operand.vmem [shape: f32[32,4], index: 3, kind: input, shape index: {}]
  %s4 = inlined_call_operand.vmem [shape: f32[5,32], index: 4, kind: input, shape index: {}]
  %s5 = inlined_call_operand.vmem [shape: f32[8,4], index: 5, kind: output, shape index: {}]
  %s6 = sld [smem:[#allocation0]]
  $region34: #{mishnn_forward.1} parent=0
    _
  %s8 = ssub.s32 1, %s6
  %s9 = scalar_select 0, %s8, %s6
  $region1: #{mishnn_forward.1} parent=0
    #allocation2 [shape = 'u8[8192]{0}', space=vmem, size = 0x2000, scoped, tag = 'input window, operand 1, single buffered']
    #allocation3 [shape = 's32[1]{0}', space=sflag, size = 0x4, scoped, tag = 'scoped memory for mishnn_forward.1']
    %10 = vsyncpa [#allocation3], 0
    // Predicated region
    $region2: #{mishnn_forward.1} parent=1 // pred_check
      _
    $region3: #{mishnn_forward.1} parent=1 // pred_check_branch
      %12 = sbr.rel (0) target = $region5
    $region4: #{mishnn_forward.1} parent=1 // pred_region
      _
    $region5: #{mishnn_forward.1} parent=1 // pred_fallthru
      _
    // Predicated region
    $region6: #{mishnn_forward.1} parent=1 // pred_check
      _
    $region7: #{mishnn_forward.1} parent=1 // pred_check_branch
      %14 = sbr.rel (0) target = $region9
    $region8: #{mishnn_forward.1} parent=1 // pred_region
      %16 = vsyncadd [#allocation3], 0
      %s17 = sshll.u32 %s1, 4
      %s18 = int_to_ptr.hbm [resolvable:$true] %s17
      %s19 = sshll.u32 [#allocation2], 4
      %s20 = int_to_ptr.vmem [resolvable:$true] %s19
      %25 = dma.hbm_to_vmem [thread:$0]  %s18, 256, %s20, [#allocation3], 128, 128, 8
    $region9: #{mishnn_forward.1} parent=1 // pred_fallthru
      _
    // Predicated region
    $region10: #{mishnn_forward.1} parent=1 // pred_check
      _
    $region11: #{mishnn_forward.1} parent=1 // pred_check_branch
      %27 = sbr.rel (0) target = $region13
    $region12: #{mishnn_forward.1} parent=1 // pred_region
      _
    $region13: #{mishnn_forward.1} parent=1 // pred_fallthru
      _
    // Predicated region
    $region14: #{mishnn_forward.1} parent=1 // pred_check
      _
    $region15: #{mishnn_forward.1} parent=1 // pred_check_branch
      %29 = sbr.rel (0) target = $region17
    $region16: #{mishnn_forward.1} parent=1 // pred_region
      _
    $region17: #{mishnn_forward.1} parent=1 // pred_fallthru
      _
    // Predicated region
    $region18: #{mishnn_forward.1} parent=1 // pred_check
      _
    $region19: #{mishnn_forward.1} parent=1 // pred_check_branch
      %31 = sbr.rel (0) target = $region21
    $region20: #{mishnn_forward.1} parent=1 // pred_region
      _
    $region21: #{mishnn_forward.1} parent=1 // pred_fallthru
      _
    // Predicated region
    $region22: #{mishnn_forward.1} parent=1 // pred_check
      _
    $region23: #{mishnn_forward.1} parent=1 // pred_check_branch
      %33 = sbr.rel (0) target = $region25
    $region24: #{mishnn_forward.1} parent=1 // pred_region
      %35 = dma.done [#allocation3], 256
    $region25: #{mishnn_forward.1} parent=1 // pred_fallthru
      _
    %v36 = vld [vmem:[%s0] sm:$0xff]
    %v37 = vld [vmem:[%s4] sm:$0x1f]
    %v38 = vld [vmem:[#allocation2] sm:$0xff]
    %v39 = vld [vmem:[#allocation2 + $0x8] sm:$0xff]
    %vm40 = vcmask 130048
    %v42 = vsel %vm40, %v36, 0
    %44 = vmatpush.msra.mxu0 0.0
    %45 = vmatpush.msra.mxu0 0.0
    %46 = vmatpush.msra.mxu0 0.0
    %47 = vmatpush.msra.mxu0 0.0
    %48 = vmatpush.msra.mxu0 0.0
    %49 = vmatpush.msra.mxu0 0.0
    %50 = vmatpush.msra.mxu0 0.0
    %51 = vmatpush.msra.mxu0 0.0
    %52 = vmatpush.msra.mxu0 0.0
    %53 = vmatpush.msra.mxu0 0.0
    %54 = vmatpush.msra.mxu0 0.0
    %55 = vmatpush.msra.mxu0 0.0
    %56 = vmatpush.msra.mxu0 0.0
    %57 = vmatpush.msra.mxu0 0.0
    %58 = vmatpush.msra.mxu0 %v39
    %59 = vmatpush.msra.mxu0 %v38
    %60 = vmatmul.f32.gmra.mxu0 %v42
    %v61 = vpop.f32.mrf.mxu0
    %v62 = vadd.f32 0.0, %v61
    %63 = vdwg.mxu0
    %vm64 = vcmask 261120
    %v65 = vsel %vm64, %v62, 0.0
    %v66 = vrot.slane %v65, 4
    %v67 = vadd.f32 %v65, %v66
    %v68 = vrot.slane %v67, 2
    %v69 = vadd.f32 %v67, %v68
    %v70 = vrot.slane %v69, 1
    %v71 = vadd.f32 %v69, %v70
    %v72 = vmul.f32 %v71, 0.125
    %v73 = vmul.f32 %v62, %v62
    %v74 = vsel %vm64, %v73, 0.0
    %v75 = vrot.slane %v74, 4
    %v76 = vadd.f32 %v74, %v75
    %v77 = vrot.slane %v76, 2
    %v78 = vadd.f32 %v76, %v77
    %v79 = vrot.slane %v78, 1
    %v80 = vadd.f32 %v78, %v79
    %v81 = vmul.f32 %v80, 0.125
    %v82 = vmul.f32 %v72, %v72
    %v83 = vsub.f32 %v81, %v82
    %v84 = vadd.f32 %v83, 1e-05
    %v85 = vrsqrt.pop %v84
    %v86 = vmul.f32 %v85, %v84
    %v87 = vmul.f32 %v86, %v85
    %v88 = vmul.f32 0.5, %v87
    %v89 = vsub.f32 1.5, %v88
    %v90 = vmul.f32 %v85, %v89
    %vm91 = vweird.f32 %v84
    %vm92 = vweird.f32 %v85
    %vm93 = vmor %vm91, %vm92
    %v94 = vsel %vm93, %v85, %v90
    %v95 = vmul.f32 %v37, %v94
    %v96 = vmul.f32 %v72, %v95
    %v98 = vrot.slane %v96, 7
    %v100 = vsub.f32 %v37, %v98
    %v101 = vperm.slane %v95, 0
    %v102 = vmul.f32 %v62, %v101
    %v103 = vperm.slane %v100, 1
    %v104 = vadd.f32 %v102, %v103
    %v105 = vmin.f32 %v104, 20.0
    %v106 = vmul.f32 %v105, 1.442695
    %v107 = vpow.pop %v106
    %v108 = vadd.f32 %v107, 1.0
    %v109 = vmul.f32 %v108, %v108
    %v110 = vmul.f32 %v104, 2.0
    %v111 = vadd.f32 %v109, 1.0
    %v112 = vrcp.pop %v111
    %v113 = vmul.f32 %v110, %v112
    %v114 = vsub.f32 %v104, %v113
    %v115 = vld [vmem:[%s2] sm:$0xff]
    %v116 = vld [vmem:[%s2 + $0x8] sm:$0xff]
    %v117 = vld [vmem:[%s2 + $0x10] sm:$0xff]
    %v118 = vld [vmem:[%s2 + $0x18] sm:$0xff]
    %v120 = vsel %vm64, %v114, 0
    %122 = vmatpush.msra.mxu0 0.0
    %123 = vmatpush.msra.mxu0 0.0
    %124 = vmatpush.msra.mxu0 0.0
    %125 = vmatpush.msra.mxu0 0.0
    %126 = vmatpush.msra.mxu0 0.0
    %127 = vmatpush.msra.mxu0 0.0
    %128 = vmatpush.msra.mxu0 0.0
    %129 = vmatpush.msra.mxu0 0.0
    %130 = vmatpush.msra.mxu0 0.0
    %131 = vmatpush.msra.mxu0 0.0
    %132 = vmatpush.msra.mxu0 0.0
    %133 = vmatpush.msra.mxu0 0.0
    %134 = vmatpush.msra.mxu0 %v118
    %135 = vmatpush.msra.mxu0 %v117
    %136 = vmatpush.msra.mxu0 %v116
    %137 = vmatpush.msra.mxu0 %v115
    %138 = vmatmul.f32.gmra.mxu0 %v120
    %v139 = vpop.f32.mrf.mxu0
    %v140 = vadd.f32 0.0, %v139
    %141 = vdwg.mxu0
    %v142 = vsel %vm64, %v140, 0.0
    %v143 = vrot.slane %v142, 4
    %v144 = vadd.f32 %v142, %v143
    %v145 = vrot.slane %v144, 2
    %v146 = vadd.f32 %v144, %v145
    %v147 = vrot.slane %v146, 1
    %v148 = vadd.f32 %v146, %v147
    %v149 = vmul.f32 %v148, 0.125
    %v150 = vmul.f32 %v140, %v140
    %v151 = vsel %vm64, %v150, 0.0
    %v152 = vrot.slane %v151, 4
    %v153 = vadd.f32 %v151, %v152
    %v154 = vrot.slane %v153, 2
    %v155 = vadd.f32 %v153, %v154
    %v156 = vrot.slane %v155, 1
    %v157 = vadd.f32 %v155, %v156
    %v158 = vmul.f32 %v157, 0.125
    %v159 = vmul.f32 %v149, %v149
    %v160 = vsub.f32 %v158, %v159
    %v161 = vadd.f32 %v160, 1e-05
    %v162 = vrsqrt.pop %v161
    %v163 = vmul.f32 %v162, %v161
    %v164 = vmul.f32 %v163, %v162
    %v165 = vmul.f32 0.5, %v164
    %v166 = vsub.f32 1.5, %v165
    %v167 = vmul.f32 %v162, %v166
    %vm168 = vweird.f32 %v161
    %vm169 = vweird.f32 %v162
    %vm170 = vmor %vm168, %vm169
    %v171 = vsel %vm170, %v162, %v167
    %v172 = vmul.f32 %v37, %v171
    %v173 = vmul.f32 %v149, %v172
    %v175 = vrot.slane %v173, 7
    %v177 = vsub.f32 %v37, %v175
    %v178 = vperm.slane %v172, 2
    %v179 = vmul.f32 %v140, %v178
    %v180 = vperm.slane %v177, 3
    %v181 = vadd.f32 %v179, %v180
    %v182 = vmin.f32 %v181, 20.0
    %v183 = vmul.f32 %v182, 1.442695
    %v184 = vpow.pop %v183
    %v185 = vadd.f32 %v184, 1.0
    %v186 = vmul.f32 %v185, %v185
    %v187 = vmul.f32 %v181, 2.0
    %v188 = vadd.f32 %v186, 1.0
    %v189 = vrcp.pop %v188
    %v190 = vmul.f32 %v187, %v189
    %v191 = vsub.f32 %v181, %v190
    %v192 = vld [vmem:[%s3] sm:$0xff]
    %v193 = vld [vmem:[%s3 + $0x8] sm:$0xff]
    %v194 = vld [vmem:[%s3 + $0x10] sm:$0xff]
    %v195 = vld [vmem:[%s3 + $0x18] sm:$0xff]
    %v196 = vperm.slane %v37, 4
    %v198 = vsel %vm64, %v191, 0
    %200 = vmatpush.msra.mxu0 0.0
    %201 = vmatpush.msra.mxu0 0.0
    %202 = vmatpush.msra.mxu0 0.0
    %203 = vmatpush.msra.mxu0 0.0
    %204 = vmatpush.msra.mxu0 0.0
    %205 = vmatpush.msra.mxu0 0.0
    %206 = vmatpush.msra.mxu0 0.0
    %207 = vmatpush.msra.mxu0 0.0
    %208 = vmatpush.msra.mxu0 0.0
    %209 = vmatpush.msra.mxu0 0.0
    %210 = vmatpush.msra.mxu0 0.0
    %211 = vmatpush.msra.mxu0 0.0
    %212 = vmatpush.msra.mxu0 %v195
    %213 = vmatpush.msra.mxu0 %v194
    %214 = vmatpush.msra.mxu0 %v193
    %215 = vmatpush.msra.mxu0 %v192
    %216 = vmatmul.f32.gmra.mxu0 %v198
    %v217 = vpop.f32.mrf.mxu0
    %v218 = vadd.f32 %v196, %v217
    %219 = vdwg.mxu0
    %vm220 = vcmask 31744
    %221 = vst.msk [vmem:[%s5] sm:$0xff] %vm220, %v218
    // Predicated region
    $region26: #{mishnn_forward.1} parent=1 // pred_check
      _
    $region27: #{mishnn_forward.1} parent=1 // pred_check_branch
      %223 = sbr.rel (0) target = $region29
    $region28: #{mishnn_forward.1} parent=1 // pred_region
      _
    $region29: #{mishnn_forward.1} parent=1 // pred_fallthru
      _
    // Predicated region
    $region30: #{mishnn_forward.1} parent=1 // pred_check
      _
    $region31: #{mishnn_forward.1} parent=1 // pred_check_branch
      %225 = sbr.rel (0) target = $region33
    $region32: #{mishnn_forward.1} parent=1 // pred_region
      _
    $region33: #{mishnn_forward.1} parent=1 // pred_fallthru
      _
    %226 = vsyncpa [#allocation3], 1

</llo_original>
